<compile_context>
chip_gen: v5e
topology: v5e:2x2
jax: 0.10.0
libtpu: 0.0.40
codegen_flags: <defaults>
</compile_context>

<pallas_src>
import functools
import numpy as np
import jax
import jax.numpy as jnp
from jax import lax
from jax.experimental import pallas as pl
from jax.experimental.pallas import tpu as pltpu

# ---- model config (small, consistent with the module) ----
B = 2              # batch
T = 8              # sequence length (block_size)
C = 32             # n_embd
N_HEAD = 4
HS = C // N_HEAD   # head_size = 8
NEG = -1e30        # large finite negative for masking (NaN-safe vs -inf)
# NOTE: with NEG, a fully-masked (padding) row would yield a uniform softmax
# (average of V) rather than zeros; fine for the causal-only case here.


def mha_kernel(x_ref, wqkv_ref, wp_ref, bp_ref, o_ref, *, seq, n_head,
               head_size):
    # x_ref: (1, T, C); wqkv_ref: (C, 3C) bf16 (Q cols pre-scaled);
    # wp_ref: (C, C) bf16; bp_ref: (1, C) f32; o_ref: (1, T, C) f32.
    c = n_head * head_size
    x = x_ref[0].astype(jnp.bfloat16)                          # (T, C)

    # One fused QKV projection on the MXU, f32 accumulation.
    qkv = jnp.dot(x, wqkv_ref[...],
                  preferred_element_type=jnp.float32)          # (T, 3C)

    # Gather per-head (T, hs) slabs onto a leading head axis: (H, T, hs).
    # (static lane slices + leading-axis stack: robust Mosaic lowering)
    def heads(mat):                                            # mat: (T, C)
        return jnp.stack(
            [mat[:, h * head_size:(h + 1) * head_size] for h in range(n_head)],
            axis=0)

    qh = heads(qkv[:, 0:c]).astype(jnp.bfloat16)               # scale already in W
    kh = heads(qkv[:, c:2 * c]).astype(jnp.bfloat16)
    vh = heads(qkv[:, 2 * c:3 * c]).astype(jnp.bfloat16)

    # Batched-over-heads scores + causal mask (built once) + one softmax.
    s = jnp.einsum("hqd,hkd->hqk", qh, kh,
                   preferred_element_type=jnp.float32)         # (H, T, T) f32
    row = lax.broadcasted_iota(jnp.int32, (seq, seq), 0)
    col = lax.broadcasted_iota(jnp.int32, (seq, seq), 1)
    s = jnp.where((row >= col)[None], s, NEG)

    m = jnp.max(s, axis=-1, keepdims=True)
    p = jnp.exp(s - m)
    l = jnp.sum(p, axis=-1, keepdims=True)
    p = p * pl.reciprocal(l, approx=True)      # EUP slot; ~2^-12 rel error

    # TODO(synk): per-head attention dropout omitted (eval mode / p = 0).
    ctx = jnp.einsum("hqk,hkd->hqd", p.astype(jnp.bfloat16), vh,
                     preferred_element_type=jnp.float32)       # (H, T, hs)

    # Concat heads back onto the lane axis -> (T, C); ONE output projection
    # with contraction K = C, bias added once.
    cat = jnp.concatenate([ctx[h] for h in range(n_head)], axis=-1)  # (T, C)
    out = jnp.dot(cat.astype(jnp.bfloat16), wp_ref[...],
                  preferred_element_type=jnp.float32) + bp_ref[...]

    # TODO(synk): output dropout omitted (eval mode / p = 0).
    # TODO(synk): if T/C scale up, switch to flash-style KV tiling sized for
    # v7x's 64 MiB VMEM and set vmem_limit_bytes explicitly.
    o_ref[0] = out.astype(o_ref.dtype)


def multi_head_attention(x, wq, wk, wv, wp_t, bp):
    """x: (B,T,C); wq/wk/wv: (C,C) packed per-head & pre-transposed
    (q = x @ wq); wp_t: (C,C) = proj.weight.T; bp: (C,) = proj.bias."""
    b, t, c = x.shape
    hs = c // N_HEAD
    scale = jnp.float32(hs) ** -0.5

    # Fold the attention scale into the Q columns, pack Q/K/V into a single
    # (C, 3C) weight, and pre-cast MXU weight operands to bf16.
    w_qkv = jnp.concatenate([wq * scale, wk, wv], axis=1).astype(jnp.bfloat16)
    wp_bf = wp_t.astype(jnp.bfloat16)
    bp2 = bp.reshape(1, c).astype(jnp.float32)

    kernel = functools.partial(mha_kernel, seq=t, n_head=N_HEAD, head_size=hs)
    out = pl.pallas_call(
        kernel,
        out_shape=jax.ShapeDtypeStruct((b, t, c), jnp.float32),
        grid=(b,),
        in_specs=[
            pl.BlockSpec((1, t, c), lambda i: (i, 0, 0)),      # x (per batch)
            pl.BlockSpec((c, 3 * c), lambda i: (0, 0)),        # packed QKV W
            pl.BlockSpec((c, c), lambda i: (0, 0)),            # proj W^T
            pl.BlockSpec((1, c), lambda i: (0, 0)),            # proj bias
        ],
        out_specs=pl.BlockSpec((1, t, c), lambda i: (i, 0, 0)),
        compiler_params=pltpu.CompilerParams(
            dimension_semantics=("parallel",)),                # v7x: 2 TCs
    )(x, w_qkv, wp_bf, bp2)
    return out


def reference(x, wq, wk, wv, wp_t, bp):
    """Pure-JAX f32 reference of the same math (for verification)."""
    t = x.shape[1]
    outs = []
    for h in range(N_HEAD):
        sl = slice(h * HS, (h + 1) * HS)
        q = x @ wq[:, sl]
        k = x @ wk[:, sl]
        v = x @ wv[:, sl]
        s = jnp.einsum("btd,bsd->bts", q, k) * (HS ** -0.5)
        mask = jnp.tril(jnp.ones((t, t), dtype=bool))
        s = jnp.where(mask[None], s, -jnp.inf)
        p = jax.nn.softmax(s, axis=-1)
        outs.append(jnp.einsum("bts,bsd->btd", p, v))
    cat = jnp.concatenate(outs, axis=-1)
    return cat @ wp_t + bp


if __name__ == "__main__":
    key = jax.random.PRNGKey(0)
    kx, kq, kk, kv, kp, kb = jax.random.split(key, 6)

    x = jax.random.normal(kx, (B, T, C), dtype=jnp.float32)

    # nn.Linear(n_embd, head_size, bias=False) per head, packed & transposed:
    # Wq[:, h*hs:(h+1)*hs] = (head h weight).T   -> shape (C, C)
    wq = jax.random.normal(kq, (C, C), dtype=jnp.float32) * 0.1
    wk = jax.random.normal(kk, (C, C), dtype=jnp.float32) * 0.1
    wv = jax.random.normal(kv, (C, C), dtype=jnp.float32) * 0.1

    # nn.Linear(n_embd, n_embd): weight (C, C) -> pass transposed; bias (C,)
    wp_t = jax.random.normal(kp, (C, C), dtype=jnp.float32) * 0.1
    bp = jax.random.normal(kb, (C,), dtype=jnp.float32) * 0.1

    out = multi_head_attention(x, wq, wk, wv, wp_t, bp)
    out = jax.block_until_ready(out)

    ref = reference(x, wq, wk, wv, wp_t, bp)
    # Tolerance relaxed vs the all-f32 version: MXU operands are bf16 (per
    # perf review) and the softmax uses the EUP approximate reciprocal.
    np.testing.assert_allclose(np.asarray(out), np.asarray(ref),
                               rtol=2e-2, atol=2e-2)
    print("KERNEL_OK")
</pallas_src>

<mosaic_0001>
module attributes {stable_mosaic.version = 11 : i64} {
  func.func @mha_kernel(%arg0: i32, %arg1: memref<1x8x32xf32, #tpu.memory_space<vmem>>, %arg2: memref<32x96xbf16, #tpu.memory_space<vmem>>, %arg3: memref<32x32xbf16, #tpu.memory_space<vmem>>, %arg4: memref<1x32xf32, #tpu.memory_space<vmem>>, %arg5: memref<1x8x32xf32, #tpu.memory_space<vmem>>) attributes {dimension_semantics = [#tpu.dimension_semantics<parallel>], iteration_bounds = array<i64: 2>, scalar_prefetch = 0 : i64, scratch_operands = 0 : i64, tpu.core_type = #tpu.core_type<tc>, window_params = [{transform_indices = @transform_0, window_bounds = array<i64: 1, 8, 32>}, {pipeline_mode = #tpu.pipeline_mode<synchronous>, transform_indices = @transform_1, window_bounds = array<i64: 32, 96>}, {pipeline_mode = #tpu.pipeline_mode<synchronous>, transform_indices = @transform_2, window_bounds = array<i64: 32, 32>}, {pipeline_mode = #tpu.pipeline_mode<synchronous>, transform_indices = @transform_3, window_bounds = array<i64: 1, 32>}, {transform_indices = @transform_4, window_bounds = array<i64: 1, 8, 32>}]} {
    %c0 = arith.constant 0 : index
    %c0_0 = arith.constant 0 : index
    %c0_1 = arith.constant 0 : index
    %0 = vector.load %arg1[%c0, %c0_0, %c0_1] : memref<1x8x32xf32, #tpu.memory_space<vmem>>, vector<1x8x32xf32>
    %1 = vector.shape_cast %0 : vector<1x8x32xf32> to vector<8x32xf32>
    %2 = arith.truncf %1 : vector<8x32xf32> to vector<8x32xbf16>
    %c0_2 = arith.constant 0 : index
    %c0_3 = arith.constant 0 : index
    %3 = vector.load %arg2[%c0_2, %c0_3] : memref<32x96xbf16, #tpu.memory_space<vmem>>, vector<32x96xbf16>
    %cst = arith.constant dense<0.000000e+00> : vector<8x96xf32>
    %4 = tpu.matmul %2, %3, %cst {dimension_numbers = #tpu.dot_dimension_numbers<[1], [0], [0], [1], [0, 0, 1, 1], [], []>} : vector<8x32xbf16>, vector<32x96xbf16>, vector<8x96xf32> -> vector<8x96xf32>
    %5 = vector.extract_strided_slice %4 {offsets = [0, 0], sizes = [8, 32], strides = [1, 1]} : vector<8x96xf32> to vector<8x32xf32>
    %6 = vector.extract_strided_slice %5 {offsets = [0, 0], sizes = [8, 8], strides = [1, 1]} : vector<8x32xf32> to vector<8x8xf32>
    %7 = vector.extract_strided_slice %5 {offsets = [0, 8], sizes = [8, 8], strides = [1, 1]} : vector<8x32xf32> to vector<8x8xf32>
    %8 = vector.extract_strided_slice %5 {offsets = [0, 16], sizes = [8, 8], strides = [1, 1]} : vector<8x32xf32> to vector<8x8xf32>
    %9 = vector.extract_strided_slice %5 {offsets = [0, 24], sizes = [8, 8], strides = [1, 1]} : vector<8x32xf32> to vector<8x8xf32>
    %10 = vector.shape_cast %6 : vector<8x8xf32> to vector<1x8x8xf32>
    %11 = vector.shape_cast %7 : vector<8x8xf32> to vector<1x8x8xf32>
    %12 = vector.shape_cast %8 : vector<8x8xf32> to vector<1x8x8xf32>
    %13 = vector.shape_cast %9 : vector<8x8xf32> to vector<1x8x8xf32>
    %14 = tpu.concatenate %10, %11, %12, %13 in 0 : vector<1x8x8xf32>, vector<1x8x8xf32>, vector<1x8x8xf32>, vector<1x8x8xf32> -> vector<4x8x8xf32>
    %15 = arith.truncf %14 : vector<4x8x8xf32> to vector<4x8x8xbf16>
    %16 = vector.extract_strided_slice %4 {offsets = [0, 32], sizes = [8, 32], strides = [1, 1]} : vector<8x96xf32> to vector<8x32xf32>
    %17 = vector.extract_strided_slice %16 {offsets = [0, 0], sizes = [8, 8], strides = [1, 1]} : vector<8x32xf32> to vector<8x8xf32>
    %18 = vector.extract_strided_slice %16 {offsets = [0, 8], sizes = [8, 8], strides = [1, 1]} : vector<8x32xf32> to vector<8x8xf32>
    %19 = vector.extract_strided_slice %16 {offsets = [0, 16], sizes = [8, 8], strides = [1, 1]} : vector<8x32xf32> to vector<8x8xf32>
    %20 = vector.extract_strided_slice %16 {offsets = [0, 24], sizes = [8, 8], strides = [1, 1]} : vector<8x32xf32> to vector<8x8xf32>
    %21 = vector.shape_cast %17 : vector<8x8xf32> to vector<1x8x8xf32>
    %22 = vector.shape_cast %18 : vector<8x8xf32> to vector<1x8x8xf32>
    %23 = vector.shape_cast %19 : vector<8x8xf32> to vector<1x8x8xf32>
    %24 = vector.shape_cast %20 : vector<8x8xf32> to vector<1x8x8xf32>
    %25 = tpu.concatenate %21, %22, %23, %24 in 0 : vector<1x8x8xf32>, vector<1x8x8xf32>, vector<1x8x8xf32>, vector<1x8x8xf32> -> vector<4x8x8xf32>
    %26 = arith.truncf %25 : vector<4x8x8xf32> to vector<4x8x8xbf16>
    %27 = vector.extract_strided_slice %4 {offsets = [0, 64], sizes = [8, 32], strides = [1, 1]} : vector<8x96xf32> to vector<8x32xf32>
    %28 = vector.extract_strided_slice %27 {offsets = [0, 0], sizes = [8, 8], strides = [1, 1]} : vector<8x32xf32> to vector<8x8xf32>
    %29 = vector.extract_strided_slice %27 {offsets = [0, 8], sizes = [8, 8], strides = [1, 1]} : vector<8x32xf32> to vector<8x8xf32>
    %30 = vector.extract_strided_slice %27 {offsets = [0, 16], sizes = [8, 8], strides = [1, 1]} : vector<8x32xf32> to vector<8x8xf32>
    %31 = vector.extract_strided_slice %27 {offsets = [0, 24], sizes = [8, 8], strides = [1, 1]} : vector<8x32xf32> to vector<8x8xf32>
    %32 = vector.shape_cast %28 : vector<8x8xf32> to vector<1x8x8xf32>
    %33 = vector.shape_cast %29 : vector<8x8xf32> to vector<1x8x8xf32>
    %34 = vector.shape_cast %30 : vector<8x8xf32> to vector<1x8x8xf32>
    %35 = vector.shape_cast %31 : vector<8x8xf32> to vector<1x8x8xf32>
    %36 = tpu.concatenate %32, %33, %34, %35 in 0 : vector<1x8x8xf32>, vector<1x8x8xf32>, vector<1x8x8xf32>, vector<1x8x8xf32> -> vector<4x8x8xf32>
    %37 = arith.truncf %36 : vector<4x8x8xf32> to vector<4x8x8xbf16>
    "tpu.trace_start"() <{level = 10 : i32, message = "hqd,hkd->hqk"}> : () -> ()
    %cst_4 = arith.constant dense<0.000000e+00> : vector<4x8x8xf32>
    %38 = tpu.matmul %15, %26, %cst_4 {dimension_numbers = #tpu.dot_dimension_numbers<[2], [2], [1], [1], [0, 0, 0, 1, 1, 1], [0], [0]>} : vector<4x8x8xbf16>, vector<4x8x8xbf16>, vector<4x8x8xf32> -> vector<4x8x8xf32>
    "tpu.trace_stop"() : () -> ()
    %39 = tpu.iota {dimensions = array<i32: 0>} : vector<8x8xi32>
    %40 = tpu.iota {dimensions = array<i32: 1>} : vector<8x8xi32>
    %41 = arith.cmpi sge, %39, %40 : vector<8x8xi32>
    %42 = vector.shape_cast %41 : vector<8x8xi1> to vector<1x8x8xi1>
    %cst_5 = arith.constant -1.000000e+30 : f32
    %43 = vector.shape_cast %42 : vector<1x8x8xi1> to vector<1x8x8xi1>
    %44 = vector.broadcast %43 : vector<1x8x8xi1> to vector<4x8x8xi1>
    %45 = vector.broadcast %cst_5 : f32 to vector<4x8x8xf32>
    %46 = arith.select %44, %38, %45 : vector<4x8x8xi1>, vector<4x8x8xf32>
    %cst_6 = arith.constant dense<0xFF800000> : vector<4x8xf32>
    %47 = vector.multi_reduction <maximumf>, %46, %cst_6 [2] : vector<4x8x8xf32> to vector<4x8xf32>
    %48 = vector.shape_cast %47 : vector<4x8xf32> to vector<4x8x1xf32>
    %49 = vector.broadcast %48 : vector<4x8x1xf32> to vector<4x8x8xf32>
    %50 = arith.subf %46, %49 : vector<4x8x8xf32>
    %51 = math.exp %50 : vector<4x8x8xf32>
    %cst_7 = arith.constant dense<0.000000e+00> : vector<4x8xf32>
    %52 = vector.multi_reduction <add>, %51, %cst_7 [2] : vector<4x8x8xf32> to vector<4x8xf32>
    %53 = vector.shape_cast %52 : vector<4x8xf32> to vector<4x8x1xf32>
    %54 = tpu.reciprocal %53 {approx = true} : vector<4x8x1xf32> -> vector<4x8x1xf32>
    %55 = vector.broadcast %54 : vector<4x8x1xf32> to vector<4x8x8xf32>
    %56 = arith.mulf %51, %55 : vector<4x8x8xf32>
    %57 = arith.truncf %56 : vector<4x8x8xf32> to vector<4x8x8xbf16>
    "tpu.trace_start"() <{level = 10 : i32, message = "hqk,hkd->hqd"}> : () -> ()
    %cst_8 = arith.constant dense<0.000000e+00> : vector<4x8x8xf32>
    %58 = tpu.matmul %57, %37, %cst_8 {dimension_numbers = #tpu.dot_dimension_numbers<[2], [1], [1], [2], [0, 0, 0, 1, 1, 2], [0], [0]>} : vector<4x8x8xbf16>, vector<4x8x8xbf16>, vector<4x8x8xf32> -> vector<4x8x8xf32>
    "tpu.trace_stop"() : () -> ()
    %59 = vector.extract_strided_slice %58 {offsets = [0, 0, 0], sizes = [1, 8, 8], strides = [1, 1, 1]} : vector<4x8x8xf32> to vector<1x8x8xf32>
    %60 = vector.shape_cast %59 : vector<1x8x8xf32> to vector<8x8xf32>
    %61 = vector.extract_strided_slice %58 {offsets = [1, 0, 0], sizes = [1, 8, 8], strides = [1, 1, 1]} : vector<4x8x8xf32> to vector<1x8x8xf32>
    %62 = vector.shape_cast %61 : vector<1x8x8xf32> to vector<8x8xf32>
    %63 = vector.extract_strided_slice %58 {offsets = [2, 0, 0], sizes = [1, 8, 8], strides = [1, 1, 1]} : vector<4x8x8xf32> to vector<1x8x8xf32>
    %64 = vector.shape_cast %63 : vector<1x8x8xf32> to vector<8x8xf32>
    %65 = vector.extract_strided_slice %58 {offsets = [3, 0, 0], sizes = [1, 8, 8], strides = [1, 1, 1]} : vector<4x8x8xf32> to vector<1x8x8xf32>
    %66 = vector.shape_cast %65 : vector<1x8x8xf32> to vector<8x8xf32>
    %67 = tpu.concatenate %60, %62, %64, %66 in 1 : vector<8x8xf32>, vector<8x8xf32>, vector<8x8xf32>, vector<8x8xf32> -> vector<8x32xf32>
    %68 = arith.truncf %67 : vector<8x32xf32> to vector<8x32xbf16>
    %c0_9 = arith.constant 0 : index
    %c0_10 = arith.constant 0 : index
    %69 = vector.load %arg3[%c0_9, %c0_10] : memref<32x32xbf16, #tpu.memory_space<vmem>>, vector<32x32xbf16>
    %cst_11 = arith.constant dense<0.000000e+00> : vector<8x32xf32>
    %70 = tpu.matmul %68, %69, %cst_11 {dimension_numbers = #tpu.dot_dimension_numbers<[1], [0], [0], [1], [0, 0, 1, 1], [], []>} : vector<8x32xbf16>, vector<32x32xbf16>, vector<8x32xf32> -> vector<8x32xf32>
    %c0_12 = arith.constant 0 : index
    %c0_13 = arith.constant 0 : index
    %71 = vector.load %arg4[%c0_12, %c0_13] : memref<1x32xf32, #tpu.memory_space<vmem>>, vector<1x32xf32>
    %72 = vector.broadcast %71 : vector<1x32xf32> to vector<8x32xf32>
    %73 = arith.addf %70, %72 : vector<8x32xf32>
    %c0_14 = arith.constant 0 : index
    %c0_15 = arith.constant 0 : index
    %c0_16 = arith.constant 0 : index
    %74 = vector.load %arg5[%c0_14, %c0_15, %c0_16] : memref<1x8x32xf32, #tpu.memory_space<vmem>>, vector<1x8x32xf32>
    %75 = vector.shape_cast %74 : vector<1x8x32xf32> to vector<8x32xf32>
    %76 = vector.shape_cast %73 : vector<8x32xf32> to vector<1x8x32xf32>
    tpu.vector_store %arg5[%c0_14, %c0_15, %c0_16], %76 {strides = array<i32>} : memref<1x8x32xf32, #tpu.memory_space<vmem>>, vector<1x8x32xf32>,
    return
  }
  func.func @transform_0(%arg0: i32) -> (i32, i32, i32) {
    %c0_i32 = arith.constant 0 : i32
    %c0_i32_0 = arith.constant 0 : i32
    %c0_i32_1 = arith.constant 0 : i32
    return %arg0, %c0_i32, %c0_i32_0 : i32, i32, i32
  }
  func.func @transform_1(%arg0: i32) -> (i32, i32) {
    %c0_i32 = arith.constant 0 : i32
    %c0_i32_0 = arith.constant 0 : i32
    %c0_i32_1 = arith.constant 0 : i32
    return %c0_i32, %c0_i32_0 : i32, i32
  }
  func.func @transform_2(%arg0: i32) -> (i32, i32) {
    %c0_i32 = arith.constant 0 : i32
    %c0_i32_0 = arith.constant 0 : i32
    %c0_i32_1 = arith.constant 0 : i32
    return %c0_i32, %c0_i32_0 : i32, i32
  }
  func.func @transform_3(%arg0: i32) -> (i32, i32) {
    %c0_i32 = arith.constant 0 : i32
    %c0_i32_0 = arith.constant 0 : i32
    %c0_i32_1 = arith.constant 0 : i32
    return %c0_i32, %c0_i32_0 : i32, i32
  }
  func.func @transform_4(%arg0: i32) -> (i32, i32, i32) {
    %c0_i32 = arith.constant 0 : i32
    %c0_i32_0 = arith.constant 0 : i32
    %c0_i32_1 = arith.constant 0 : i32
    return %arg0, %c0_i32, %c0_i32_0 : i32, i32, i32
  }
}

</mosaic_0001>

<llo_original>
// kernel: tpu_custom_call.1
$region0: #{tpu_custom_call.1}
  #allocation0 [shape = 'u32[]', space=smem, size = 0x4, offset = 0x4, fixed_abs, tag = 'smem constant byte address 0x4 - core index']
  #allocation1 [shape = 'u32[72,128]{1,0:T(1,128)}', space=vmem, size = 0x9000, scoped, tag = 'internal scratch']
  %s0 = inlined_call_operand.hbm [shape: f32[2,8,32], index: 0, kind: input, shape index: {}]
  %s1 = inlined_call_operand.hbm [shape: bf16[32,96], index: 1, kind: input, shape index: {}]
  %s2 = inlined_call_operand.hbm [shape: bf16[32,32], index: 2, kind: input, shape index: {}]
  %s3 = inlined_call_operand.vmem [shape: f32[1,32], index: 3, kind: input, shape index: {}]
  %s4 = inlined_call_operand.hbm [shape: f32[2,8,32], index: 4, kind: output, shape index: {}]
  %s5 = sld [smem:[#allocation0]]
  $region61: #{tpu_custom_call.1} parent=0
    _
  %s7 = ssub.s32 1, %s5
  %s8 = scalar_select 0, %s7, %s5
  $region1: #{tpu_custom_call.1} parent=0
    #allocation2 [shape = 'u8[8192]{0}', space=vmem, size = 0x2000, scoped, tag = 'input window, operand 0']
    #allocation3 [shape = 's32[2]{0}', space=sflag, size = 0x8, scoped, tag = 'scoped memory for tpu_custom_call.1']
    #allocation4 [shape = 's32[2]{0}', space=sflag, size = 0x8, scoped, tag = 'scoped memory for tpu_custom_call.1']
    #allocation5 [shape = 'u8[8192]{0}', space=vmem, size = 0x2000, scoped, tag = 'input window, operand 1, single buffered']
    #allocation6 [shape = 's32[1]{0}', space=sflag, size = 0x4, scoped, tag = 'scoped memory for tpu_custom_call.1']
    #allocation7 [shape = 'u8[8192]{0}', space=vmem, size = 0x2000, scoped, tag = 'input window, operand 2, single buffered']
    #allocation8 [shape = 'u8[8192]{0}', space=vmem, size = 0x2000, scoped, tag = 'output window, operand 0']
    %9 = vsyncpa [#allocation3], 0
    %s10 = scalar_lea.sflag [#allocation3], 1
    %11 = vsyncpa %s10, 0
    %12 = vsyncpa [#allocation6], 0
    %13 = vsyncpa [#allocation4], 0
    %s14 = scalar_lea.sflag [#allocation4], 1
    %15 = vsyncpa %s14, 0
    loop: start=0, step=1, limit=4
    $region2: #{tpu_custom_call.1} parent=1 // loop_pre_header
      _
    $region3: #{tpu_custom_call.1} parent=1 // loop_header
      %s17 = sphi 0, %s21
      %p18 = scmp.ge.s32.totalorder %s17, 4
      %s27 = sphi 0, %s29
      %s30 = sphi 0, %s27
      %s31 = sphi 0, %s30
      %s47 = sphi 0, %s31
      %s51 = sphi 0, %s51
      %s53 = sphi 0, %s51
      %s54 = sphi 0, %s53
      %s68 = sphi 0, %s54
      %s72 = sphi 0, %s72
      %s74 = sphi 0, %s72
      %s75 = sphi 0, %s74
      %s89 = sphi 0, %s75
      %s93 = sphi 0, %s93
      %s95 = sphi 0, %s93
      %s96 = sphi 0, %s95
      %s110 = sphi 0, %s96
      %s116 = sphi 0, %s118
      %s119 = sphi 0, %s116
      %s120 = sphi 0, %s119
      %s136 = sphi 0, %s120
    $region4: #{tpu_custom_call.1} parent=1 // loop_header_branch
      %20 = sbr.rel (%p18) target = $region8
    $region5: #{tpu_custom_call.1} parent=1 // loop_body
      %s22 = ssub.s32 %s17, 1
      %s23 = ssub.s32 %s17, 2
      %s24 = sadd.s32 %s17, 1
      %s25 = ssub.s32 %s17, %s24
      %p26 = scmp.eq.s32.totalorder %s25, 0
      %s28 = sadd.s32 %s27, 1
      %s29 = scalar_select %p26, %s27, %s28
      %p32 = pneg %p26
      %p33 = scmp.eq.s32.totalorder %s17, 1
      %p34 = por %p32, %p33
      %p35 = scmp.ne.s32.totalorder %s27, %s30
      %p36 = scmp.eq.s32.totalorder %s17, 0
      %p37 = por %p35, %p36
      %p38 = scmp.ne.s32.totalorder %s27, %s30
      %p39 = scmp.eq.s32.totalorder %s22, 1
      %p40 = por %p38, %p39
      %p41 = scmp.ne.s32.totalorder %s30, %s31
      %p42 = scmp.eq.s32.totalorder %s22, 0
      %p43 = por %p41, %p42
      %p44 = scmp.ne.s32.totalorder %s30, %s31
      %p45 = scmp.eq.s32.totalorder %s23, 1
      %p46 = por %p44, %p45
      %p48 = scmp.ne.s32.totalorder %s31, %s47
      %p49 = scmp.eq.s32.totalorder %s23, 0
      %p50 = por %p48, %p49
      %s52 = sadd.s32 %s51, 1
      %p55 = scmp.eq.s32.totalorder %s17, 1
      %p56 = scmp.ne.s32.totalorder %s51, %s53
      %p57 = scmp.eq.s32.totalorder %s17, 0
      %p58 = por %p56, %p57
      %p59 = scmp.ne.s32.totalorder %s51, %s53
      %p60 = scmp.eq.s32.totalorder %s22, 1
      %p61 = por %p59, %p60
      %p62 = scmp.ne.s32.totalorder %s53, %s54
      %p63 = scmp.eq.s32.totalorder %s22, 0
      %p64 = por %p62, %p63
      %p65 = scmp.ne.s32.totalorder %s53, %s54
      %p66 = scmp.eq.s32.totalorder %s23, 1
      %p67 = por %p65, %p66
      %p69 = scmp.ne.s32.totalorder %s54, %s68
      %p70 = scmp.eq.s32.totalorder %s23, 0
      %p71 = por %p69, %p70
      %s73 = sadd.s32 %s72, 1
      %p76 = scmp.eq.s32.totalorder %s17, 1
      %p77 = scmp.ne.s32.totalorder %s72, %s74
      %p78 = scmp.eq.s32.totalorder %s17, 0
      %p79 = por %p77, %p78
      %p80 = scmp.ne.s32.totalorder %s72, %s74
      %p81 = scmp.eq.s32.totalorder %s22, 1
      %p82 = por %p80, %p81
      %p83 = scmp.ne.s32.totalorder %s74, %s75
      %p84 = scmp.eq.s32.totalorder %s22, 0
      %p85 = por %p83, %p84
      %p86 = scmp.ne.s32.totalorder %s74, %s75
      %p87 = scmp.eq.s32.totalorder %s23, 1
      %p88 = por %p86, %p87
      %p90 = scmp.ne.s32.totalorder %s75, %s89
      %p91 = scmp.eq.s32.totalorder %s23, 0
      %p92 = por %p90, %p91
      %s94 = sadd.s32 %s93, 1
      %p97 = scmp.eq.s32.totalorder %s17, 1
      %p98 = scmp.ne.s32.totalorder %s93, %s95
      %p99 = scmp.eq.s32.totalorder %s17, 0
      %p100 = por %p98, %p99
      %p101 = scmp.ne.s32.totalorder %s93, %s95
      %p102 = scmp.eq.s32.totalorder %s22, 1
      %p103 = por %p101, %p102
      %p104 = scmp.ne.s32.totalorder %s95, %s96
      %p105 = scmp.eq.s32.totalorder %s22, 0
      %p106 = por %p104, %p105
      %p107 = scmp.ne.s32.totalorder %s95, %s96
      %p108 = scmp.eq.s32.totalorder %s23, 1
      %p109 = por %p107, %p108
      %p111 = scmp.ne.s32.totalorder %s96, %s110
      %p112 = scmp.eq.s32.totalorder %s23, 0
      %p113 = por %p111, %p112
      %s114 = ssub.s32 %s17, %s24
      %p115 = scmp.eq.s32.totalorder %s114, 0
      %s117 = sadd.s32 %s116, 1
      %s118 = scalar_select %p115, %s116, %s117
      %p121 = pneg %p115
      %p122 = scmp.eq.s32.totalorder %s17, 1
      %p123 = por %p121, %p122
      %p124 = scmp.ne.s32.totalorder %s116, %s119
      %p125 = scmp.eq.s32.totalorder %s17, 0
      %p126 = por %p124, %p125
      %p127 = scmp.ne.s32.totalorder %s116, %s119
      %p128 = scmp.eq.s32.totalorder %s22, 1
      %p129 = por %p127, %p128
      %p130 = scmp.ne.s32.totalorder %s119, %s120
      %p131 = scmp.eq.s32.totalorder %s22, 0
      %p132 = por %p130, %p131
      %p133 = scmp.ne.s32.totalorder %s119, %s120
      %p134 = scmp.eq.s32.totalorder %s23, 1
      %p135 = por %p133, %p134
      %p137 = scmp.ne.s32.totalorder %s120, %s136
      %p138 = scmp.eq.s32.totalorder %s23, 0
      %p139 = por %p137, %p138
      %p140 = scmp.le.s32.totalorder 1, %s17
      %p141 = scmp.lt.s32.totalorder %s17, 3
      %p142 = pnand %p140, %p141
      %p143 = pneg %p142
      // Predicated region
      $region9: #{tpu_custom_call.1} parent=5 // pred_check
        _
      $region10: #{tpu_custom_call.1} parent=5 // pred_check_branch
        %145 = sbr.rel (%p142) target = $region12
      $region11: #{tpu_custom_call.1} parent=5 // pred_region
        %s146 = ssub.s32 %s17, 1
        // Predicated region
        $region13: #{tpu_custom_call.1} parent=11 // pred_check
          %p147 = pneg %p64
        $region14: #{tpu_custom_call.1} parent=11 // pred_check_branch
          %149 = sbr.rel (%p147) target = $region16
        $region15: #{tpu_custom_call.1} parent=11 // pred_region
          %151 = vsyncadd [#allocation6], 0
          %s152 = sshll.u32 %s1, 4
          %s153 = int_to_ptr.hbm [resolvable:$true] %s152
          %s154 = sshll.u32 [#allocation5], 4
          %s155 = int_to_ptr.vmem [resolvable:$true] %s154
          %160 = dma.hbm_to_vmem [thread:$0]  %s153, 256, %s155, [#allocation6], 64, 64, 4
        $region16: #{tpu_custom_call.1} parent=11 // pred_fallthru
          _
        // Predicated region
        $region17: #{tpu_custom_call.1} parent=11 // pred_check
          %p161 = pneg %p85
        $region18: #{tpu_custom_call.1} parent=11 // pred_check_branch
          %163 = sbr.rel (%p161) target = $region20
        $region19: #{tpu_custom_call.1} parent=11 // pred_region
          %165 = vsyncadd [#allocation6], 0
          %s166 = sshll.u32 %s2, 4
          %s167 = int_to_ptr.hbm [resolvable:$true] %s166
          %s168 = sshll.u32 [#allocation7], 4
          %s169 = int_to_ptr.vmem [resolvable:$true] %s168
          %174 = dma.hbm_to_vmem [thread:$0]  %s167, 256, %s169, [#allocation6], 64, 64, 4
        $region20: #{tpu_custom_call.1} parent=11 // pred_fallthru
          _
        // Predicated region
        $region21: #{tpu_custom_call.1} parent=11 // pred_check
          %p175 = pneg %p106
        $region22: #{tpu_custom_call.1} parent=11 // pred_check_branch
          %177 = sbr.rel (%p175) target = $region24
        $region23: #{tpu_custom_call.1} parent=11 // pred_region
          _
        $region24: #{tpu_custom_call.1} parent=11 // pred_fallthru
          _
      $region12: #{tpu_custom_call.1} parent=5 // pred_fallthru
        _
      %p178 = scmp.lt.s32.totalorder %s17, 2
      // Predicated region
      $region25: #{tpu_custom_call.1} parent=5 // pred_check
        %p179 = pneg %p178
      $region26: #{tpu_custom_call.1} parent=5 // pred_check_branch
        %181 = sbr.rel (%p179) target = $region28
      $region27: #{tpu_custom_call.1} parent=5 // pred_region
        // Predicated region
        $region29: #{tpu_custom_call.1} parent=27 // pred_check
          %p182 = pneg %p37
        $region30: #{tpu_custom_call.1} parent=27 // pred_check_branch
          %184 = sbr.rel (%p182) target = $region32
        $region31: #{tpu_custom_call.1} parent=27 // pred_region
          %s185 = sand.u32 %s27, 1
          %s186 = scalar_lea.sflag [#allocation3], %s185
          %s187 = sand.u32 %s27, 1
          %s188 = smul.addr %s187, 8
          %s189 = scalar_lea.vmem [#allocation2], %s188
          %191 = vsyncadd %s186, 0
          %s192 = smul.addr %s17, 8
          %s193 = scalar_lea.hbm %s0, %s192
          %s195 = sshll.u32 %s193, 4
          %s196 = int_to_ptr.hbm [resolvable:$true] %s195
          %s197 = sshll.u32 %s189, 4
          %s198 = int_to_ptr.vmem [resolvable:$true] %s197
          %200 = dma.hbm_to_vmem [thread:$0]  %s196, 128, %s198, %s186
        $region32: #{tpu_custom_call.1} parent=27 // pred_fallthru
          _
      $region28: #{tpu_custom_call.1} parent=5 // pred_fallthru
        _
      %p201 = scmp.le.s32.totalorder 1, %s17
      %p202 = scmp.lt.s32.totalorder %s17, 3
      %p203 = pnand %p201, %p202
      %p204 = pneg %p203
      // Predicated region
      $region33: #{tpu_custom_call.1} parent=5 // pred_check
        _
      $region34: #{tpu_custom_call.1} parent=5 // pred_check_branch
        %206 = sbr.rel (%p203) target = $region36
      $region35: #{tpu_custom_call.1} parent=5 // pred_region
        %s207 = ssub.s32 %s17, 1
        %s208 = sand.u32 %s30, 1
        %s209 = scalar_lea.sflag [#allocation3], %s208
        %s210 = sand.u32 %s30, 1
        %s211 = smul.addr %s210, 8
        %s212 = scalar_lea.vmem [#allocation2], %s211
        // Predicated region
        $region37: #{tpu_custom_call.1} parent=35 // pred_check
          %p213 = pneg %p43
        $region38: #{tpu_custom_call.1} parent=35 // pred_check_branch
          %215 = sbr.rel (%p213) target = $region40
        $region39: #{tpu_custom_call.1} parent=35 // pred_region
          %217 = dma.done %s209, 128
        $region40: #{tpu_custom_call.1} parent=35 // pred_fallthru
          _
        // Predicated region
        $region41: #{tpu_custom_call.1} parent=35 // pred_check
          %p218 = pneg %p64
        $region42: #{tpu_custom_call.1} parent=35 // pred_check_branch
          %220 = sbr.rel (%p218) target = $region44
        $region43: #{tpu_custom_call.1} parent=35 // pred_region
          %222 = dma.done [#allocation6], 256
        $region44: #{tpu_custom_call.1} parent=35 // pred_fallthru
          _
        // Predicated region
        $region45: #{tpu_custom_call.1} parent=35 // pred_check
          %p223 = pneg %p85
        $region46: #{tpu_custom_call.1} parent=35 // pred_check_branch
          %225 = sbr.rel (%p223) target = $region48
        $region47: #{tpu_custom_call.1} parent=35 // pred_region
          %227 = dma.done [#allocation6], 256
        $region48: #{tpu_custom_call.1} parent=35 // pred_fallthru
          _
        %s228 = sand.u32 %s30, 1
        %s229 = scalar_lea.sflag [#allocation3], %s228
        %s230 = sand.u32 %s30, 1
        %s231 = smul.addr %s230, 8
        %s232 = scalar_lea.vmem [#allocation2], %s231
        %p233 = pneg %p43
        %p234 = pneg %p40
        %p235 = pneg %p64
        %p236 = pneg %p61
        %p237 = pneg %p85
        %p238 = pneg %p82
        %p239 = pneg %p106
        %p240 = pneg %p103
        %p241 = pneg %p132
        %p242 = pneg %p129
        %s243 = sand.u32 %s119, 1
        %s244 = scalar_lea.sflag [#allocation4], %s243
        %s245 = sand.u32 %s119, 1
        %s246 = smul.addr %s245, 8
        %s247 = scalar_lea.vmem [#allocation8], %s246
        %v249 = vld [vmem:[%s212] sm:$0xff]
        %v250 = vpack.c.bf16 %v249, %v249
        %v251 = vld [vmem:[#allocation5] sm:$0xf]
        %v252 = vld [vmem:[#allocation5 + $0x4] sm:$0xf]
        %v253 = vld [vmem:[#allocation5 + $0x8] sm:$0xf]
        %v254 = vld [vmem:[#allocation5 + $0xc] sm:$0xf]
        %v259 = vunpack.c.l.b16 %v251
        %v260 = vunpack.c.l.b16 %v252
        %v261 = vunpack.c.l.b16 %v253
        %v262 = vunpack.c.l.b16 %v254
        %v263 = vpack.c.b16 %v260, %v259
        %v264 = vpack.c.b16 %v262, %v261
        %vm267 = vcmask 261120
        %v269 = vsel %vm267, %v250, 0
        %271 = vmatpush.bf16.msra.mxu0 0
        %272 = vmatpush.bf16.msra.mxu0 0
        %273 = vmatpush.bf16.msra.mxu0 0
        %274 = vmatpush.bf16.msra.mxu0 0
        %275 = vmatpush.bf16.msra.mxu0 0
        %276 = vmatpush.bf16.msra.mxu0 0
        %277 = vmatpush.bf16.msra.mxu0 %v264
        %278 = vmatpush.bf16.msra.mxu0 %v263
        %279 = vmatmul.bf16.gmra.mxu0 %v269
        %v280 = vpop.f32.mrf.mxu0
        %v281 = vadd.f32 0.0, %v280
        %v282 = vpop.f32.mrf.mxu0
        %283 = vdwg.mxu0
        %285 = vrot.lane.b32.xlu0 %v281, 120
        %v286 = vpop.permute.xlu0 %285
        %288 = vrot.lane.b32.xlu0 %v281, 112
        %v289 = vpop.permute.xlu0 %288
        %291 = vrot.lane.b32.xlu0 %v281, 104
        %v292 = vpop.permute.xlu0 %291
        %v294 = vpack.c.bf16 %v281, %v281
        %v295 = vpack.c.bf16 %v286, %v286
        %v296 = vpack.c.bf16 %v289, %v289
        %v297 = vpack.c.bf16 %v292, %v292
        %v299 = vunpack.c.l.b16 %v294
        %v300 = vpack.c.b16 %v299, %v299
        %301 = vrot.lane.b32.xlu0 %v300, 96
        %v302 = vpop.permute.xlu0 %301
        %vm303 = vcmask 64512
        %v305 = vsel %vm303, %v294, 0
        %v308 = vsel %vm303, %v302, 0
        %310 = vmatpush.bf16.xpose.msra.mxu0 0
        %311 = vmatpush.bf16.xpose.msra.mxu0 0
        %312 = vmatpush.bf16.xpose.msra.mxu0 0
        %313 = vmatpush.bf16.xpose.msra.mxu0 0
        %314 = vmatpush.bf16.xpose.msra.mxu0 0
        %315 = vmatpush.bf16.xpose.msra.mxu0 0
        %316 = vmatpush.bf16.xpose.msra.mxu0 0
        %317 = vmatpush.bf16.xpose.msra.mxu0 %v308
        %318 = vmatmul.bf16.gmra.mxu0 %v305
        %v319 = vpop.f32.mrf.mxu0
        %v320 = vadd.f32 0.0, %v319
        %v321 = vpop.f32.mrf.mxu0
        %322 = vdwg.mxu0
        %v324 = vunpack.c.l.b16 %v295
        %v325 = vpack.c.b16 %v324, %v324
        %326 = vrot.lane.b32.xlu0 %v325, 96
        %v327 = vpop.permute.xlu0 %326
        %v329 = vsel %vm303, %v295, 0
        %v332 = vsel %vm303, %v327, 0
        %334 = vmatpush.bf16.xpose.msra.mxu0 0
        %335 = vmatpush.bf16.xpose.msra.mxu0 0
        %336 = vmatpush.bf16.xpose.msra.mxu0 0
        %337 = vmatpush.bf16.xpose.msra.mxu0 0
        %338 = vmatpush.bf16.xpose.msra.mxu0 0
        %339 = vmatpush.bf16.xpose.msra.mxu0 0
        %340 = vmatpush.bf16.xpose.msra.mxu0 0
        %341 = vmatpush.bf16.xpose.msra.mxu0 %v332
        %342 = vmatmul.bf16.gmra.mxu0 %v329
        %v343 = vpop.f32.mrf.mxu0
        %v344 = vadd.f32 0.0, %v343
        %v345 = vpop.f32.mrf.mxu0
        %346 = vdwg.mxu0
        %v348 = vunpack.c.l.b16 %v296
        %v349 = vpack.c.b16 %v348, %v348
        %350 = vrot.lane.b32.xlu0 %v349, 96
        %v351 = vpop.permute.xlu0 %350
        %v353 = vsel %vm303, %v296, 0
        %v356 = vsel %vm303, %v351, 0
        %358 = vmatpush.bf16.xpose.msra.mxu0 0
        %359 = vmatpush.bf16.xpose.msra.mxu0 0
        %360 = vmatpush.bf16.xpose.msra.mxu0 0
        %361 = vmatpush.bf16.xpose.msra.mxu0 0
        %362 = vmatpush.bf16.xpose.msra.mxu0 0
        %363 = vmatpush.bf16.xpose.msra.mxu0 0
        %364 = vmatpush.bf16.xpose.msra.mxu0 0
        %365 = vmatpush.bf16.xpose.msra.mxu0 %v356
        %366 = vmatmul.bf16.gmra.mxu0 %v353
        %v367 = vpop.f32.mrf.mxu0
        %v368 = vadd.f32 0.0, %v367
        %v369 = vpop.f32.mrf.mxu0
        %370 = vdwg.mxu0
        %v372 = vunpack.c.l.b16 %v297
        %v373 = vpack.c.b16 %v372, %v372
        %374 = vrot.lane.b32.xlu0 %v373, 96
        %v375 = vpop.permute.xlu0 %374
        %v377 = vsel %vm303, %v297, 0
        %v380 = vsel %vm303, %v375, 0
        %382 = vmatpush.bf16.xpose.msra.mxu0 0
        %383 = vmatpush.bf16.xpose.msra.mxu0 0
        %384 = vmatpush.bf16.xpose.msra.mxu0 0
        %385 = vmatpush.bf16.xpose.msra.mxu0 0
        %386 = vmatpush.bf16.xpose.msra.mxu0 0
        %387 = vmatpush.bf16.xpose.msra.mxu0 0
        %388 = vmatpush.bf16.xpose.msra.mxu0 0
        %389 = vmatpush.bf16.xpose.msra.mxu0 %v380
        %390 = vmatmul.bf16.gmra.mxu0 %v377
        %v391 = vpop.f32.mrf.mxu0
        %v392 = vadd.f32 0.0, %v391
        %v393 = vpop.f32.mrf.mxu0
        %394 = vdwg.mxu0
        %v395 = vlaneseq
        %v396 = vshrl.u32 %v395, 7
        %v397 = vlaneseq
        %v398 = vand.u32 %v397, 127
        %vm399 = vcmp.ge.s32.totalorder %v396, %v398
        %v400 = vsel %vm399, 1, 0
        %vm401 = vcmp.eq.s32.totalorder %v400, 1
        %v402 = vsel %vm401, %v320, -1e+30
        %v403 = vsel %vm401, %v344, -1e+30
        %v404 = vsel %vm401, %v368, -1e+30
        %v405 = vsel %vm401, %v392, -1e+30
        %v406 = vsel %vm303, %v402, -inf
        %407 = vmax.xlane.f32.xlu0 %v406
        %v408 = vpop.xlane.xlu0 %407
        %v409 = vsel %vm303, %v403, -inf
        %410 = vmax.xlane.f32.xlu0 %v409
        %v411 = vpop.xlane.xlu0 %410
        %v412 = vsel %vm303, %v404, -inf
        %413 = vmax.xlane.f32.xlu0 %v412
        %v414 = vpop.xlane.xlu0 %413
        %v415 = vsel %vm303, %v405, -inf
        %416 = vmax.xlane.f32.xlu0 %v415
        %v417 = vpop.xlane.xlu0 %416
        %v418 = vsub.f32 %v402, %v408
        %v419 = vsub.f32 %v403, %v411
        %v420 = vsub.f32 %v404, %v414
        %v421 = vsub.f32 %v405, %v417
        %v422 = vmul.f32 %v418, 1.442695
        %v423 = vpow.pop %v422
        %v424 = vmul.f32 %v419, 1.442695
        %v425 = vpow.pop %v424
        %v426 = vmul.f32 %v420, 1.442695
        %v427 = vpow.pop %v426
        %v428 = vmul.f32 %v421, 1.442695
        %v429 = vpow.pop %v428
        %v430 = vsel %vm303, %v423, 0.0
        %431 = vadd.xlane.f32.xlu0 %v430
        %v432 = vpop.xlane.xlu0 %431
        %v433 = vsel %vm303, %v425, 0.0
        %434 = vadd.xlane.f32.xlu0 %v433
        %v435 = vpop.xlane.xlu0 %434
        %v436 = vsel %vm303, %v427, 0.0
        %437 = vadd.xlane.f32.xlu0 %v436
        %v438 = vpop.xlane.xlu0 %437
        %v439 = vsel %vm303, %v429, 0.0
        %440 = vadd.xlane.f32.xlu0 %v439
        %v441 = vpop.xlane.xlu0 %440
        %v442 = vrcp.pop %v432
        %v443 = vrcp.pop %v435
        %v444 = vrcp.pop %v438
        %v445 = vrcp.pop %v441
        %v446 = vmul.f32 %v423, %v442
        %v447 = vmul.f32 %v425, %v443
        %v448 = vmul.f32 %v427, %v444
        %v449 = vmul.f32 %v429, %v445
        %v450 = vpack.c.bf16 %v446, %v446
        %v451 = vpack.c.bf16 %v447, %v447
        %v452 = vpack.c.bf16 %v448, %v448
        %v453 = vpack.c.bf16 %v449, %v449
        %454 = vrot.lane.b32.xlu0 %v300, 64
        %v455 = vpop.permute.xlu0 %454
        %v457 = vsel %vm303, %v450, 0
        %vm459 = vcmask 1043456
        %v461 = vsel %vm459, %v455, 0
        %463 = vmatpush.bf16.msra.mxu0 0
        %464 = vmatpush.bf16.msra.mxu0 0
        %465 = vmatpush.bf16.msra.mxu0 0
        %466 = vmatpush.bf16.msra.mxu0 0
        %467 = vmatpush.bf16.msra.mxu0 0
        %468 = vmatpush.bf16.msra.mxu0 0
        %469 = vmatpush.bf16.msra.mxu0 0
        %470 = vmatpush.bf16.msra.mxu0 %v461
        %471 = vmatmul.bf16.gmra.mxu0 %v457
        %v472 = vpop.f32.mrf.mxu0
        %v473 = vadd.f32 0.0, %v472
        %v474 = vpop.f32.mrf.mxu0
        %475 = vdwg.mxu0
        %476 = vrot.lane.b32.xlu0 %v325, 64
        %v477 = vpop.permute.xlu0 %476
        %v479 = vsel %vm303, %v451, 0
        %v482 = vsel %vm459, %v477, 0
        %484 = vmatpush.bf16.msra.mxu0 0
        %485 = vmatpush.bf16.msra.mxu0 0
        %486 = vmatpush.bf16.msra.mxu0 0
        %487 = vmatpush.bf16.msra.mxu0 0
        %488 = vmatpush.bf16.msra.mxu0 0
        %489 = vmatpush.bf16.msra.mxu0 0
        %490 = vmatpush.bf16.msra.mxu0 0
        %491 = vmatpush.bf16.msra.mxu0 %v482
        %492 = vmatmul.bf16.gmra.mxu0 %v479
        %v493 = vpop.f32.mrf.mxu0
        %v494 = vadd.f32 0.0, %v493
        %v495 = vpop.f32.mrf.mxu0
        %496 = vdwg.mxu0
        %497 = vrot.lane.b32.xlu0 %v349, 64
        %v498 = vpop.permute.xlu0 %497
        %v500 = vsel %vm303, %v452, 0
        %v503 = vsel %vm459, %v498, 0
        %505 = vmatpush.bf16.msra.mxu0 0
        %506 = vmatpush.bf16.msra.mxu0 0
        %507 = vmatpush.bf16.msra.mxu0 0
        %508 = vmatpush.bf16.msra.mxu0 0
        %509 = vmatpush.bf16.msra.mxu0 0
        %510 = vmatpush.bf16.msra.mxu0 0
        %511 = vmatpush.bf16.msra.mxu0 0
        %512 = vmatpush.bf16.msra.mxu0 %v503
        %513 = vmatmul.bf16.gmra.mxu0 %v500
        %v514 = vpop.f32.mrf.mxu0
        %v515 = vadd.f32 0.0, %v514
        %v516 = vpop.f32.mrf.mxu0
        %517 = vdwg.mxu0
        %518 = vrot.lane.b32.xlu0 %v373, 64
        %v519 = vpop.permute.xlu0 %518
        %v521 = vsel %vm303, %v453, 0
        %v524 = vsel %vm459, %v519, 0
        %526 = vmatpush.bf16.msra.mxu0 0
        %527 = vmatpush.bf16.msra.mxu0 0
        %528 = vmatpush.bf16.msra.mxu0 0
        %529 = vmatpush.bf16.msra.mxu0 0
        %530 = vmatpush.bf16.msra.mxu0 0
        %531 = vmatpush.bf16.msra.mxu0 0
        %532 = vmatpush.bf16.msra.mxu0 0
        %533 = vmatpush.bf16.msra.mxu0 %v524
        %534 = vmatmul.bf16.gmra.mxu0 %v521
        %v535 = vpop.f32.mrf.mxu0
        %v536 = vadd.f32 0.0, %v535
        %v537 = vpop.f32.mrf.mxu0
        %538 = vdwg.mxu0
        %540 = vrot.lane.b32.xlu0 %v494, 8
        %v541 = vpop.permute.xlu0 %540
        %544 = vrot.lane.b32.xlu0 %v515, 16
        %v545 = vpop.permute.xlu0 %544
        %548 = vrot.lane.b32.xlu0 %v536, 24
        %v549 = vpop.permute.xlu0 %548
        %v551 = vsel %vm303, %v473, %v541
        %vm552 = vcmask 130048
        %v553 = vsel %vm552, %v551, %v545
        %vm554 = vcmask 195584
        %v555 = vsel %vm554, %v553, %v549
        %v556 = vpack.c.bf16 %v555, %v555
        %v557 = vld [vmem:[#allocation7] sm:$0xf]
        %v558 = vld [vmem:[#allocation7 + $0x4] sm:$0xf]
        %v559 = vld [vmem:[#allocation7 + $0x8] sm:$0xf]
        %v560 = vld [vmem:[#allocation7 + $0xc] sm:$0xf]
        %v561 = vld [vmem:[%s3] sm:$0x1]
        %v563 = vperm.slane %v561, 0
        %v569 = vunpack.c.l.b16 %v557
        %v570 = vunpack.c.l.b16 %v558
        %v571 = vunpack.c.l.b16 %v559
        %v572 = vunpack.c.l.b16 %v560
        %v573 = vpack.c.b16 %v570, %v569
        %v574 = vpack.c.b16 %v572, %v571
        %v578 = vsel %vm267, %v556, 0
        %580 = vmatpush.bf16.msra.mxu0 0
        %581 = vmatpush.bf16.msra.mxu0 0
        %582 = vmatpush.bf16.msra.mxu0 0
        %583 = vmatpush.bf16.msra.mxu0 0
        %584 = vmatpush.bf16.msra.mxu0 0
        %585 = vmatpush.bf16.msra.mxu0 0
        %586 = vmatpush.bf16.msra.mxu0 %v574
        %587 = vmatpush.bf16.msra.mxu0 %v573
        %588 = vmatmul.bf16.gmra.mxu0 %v578
        %v589 = vpop.f32.mrf.mxu0
        %v590 = vadd.f32 %v563, %v589
        %v591 = vpop.f32.mrf.mxu0
        %592 = vdwg.mxu0
        %593 = vst.msk [vmem:[%s247] sm:$0xff] %vm267, %v590
        %s594 = sand.u32 %s119, 1
        %s595 = scalar_lea.sflag [#allocation4], %s594
        %s596 = sand.u32 %s119, 1
        %s597 = smul.addr %s596, 8
        %s598 = scalar_lea.vmem [#allocation8], %s597
        // Predicated region
        $region49: #{tpu_custom_call.1} parent=35 // pred_check
          %p599 = pneg %p129
        $region50: #{tpu_custom_call.1} parent=35 // pred_check_branch
          %601 = sbr.rel (%p599) target = $region52
        $region51: #{tpu_custom_call.1} parent=35 // pred_region
          %603 = vsyncadd %s595, 0
          %s604 = smul.addr %s22, 8
          %s605 = scalar_lea.hbm %s4, %s604
          %s607 = sshll.u32 %s598, 4
          %s608 = int_to_ptr.vmem [resolvable:$true] %s607
          %s609 = sshll.u32 %s605, 4
          %s610 = int_to_ptr.hbm [resolvable:$true] %s609
          %612 = dma.vmem_to_hbm [thread:$0]  %s608, 128, %s610, %s595
        $region52: #{tpu_custom_call.1} parent=35 // pred_fallthru
          _
      $region36: #{tpu_custom_call.1} parent=5 // pred_fallthru
        _
      %p613 = scmp.le.s32.totalorder 2, %s17
      // Predicated region
      $region53: #{tpu_custom_call.1} parent=5 // pred_check
        %p614 = pneg %p613
      $region54: #{tpu_custom_call.1} parent=5 // pred_check_branch
        %616 = sbr.rel (%p614) target = $region56
      $region55: #{tpu_custom_call.1} parent=5 // pred_region
        %s617 = ssub.s32 %s17, 2
        // Predicated region
        $region57: #{tpu_custom_call.1} parent=55 // pred_check
          %p618 = pneg %p135
        $region58: #{tpu_custom_call.1} parent=55 // pred_check_branch
          %620 = sbr.rel (%p618) target = $region60
        $region59: #{tpu_custom_call.1} parent=55 // pred_region
          %s621 = sand.u32 %s120, 1
          %s622 = scalar_lea.sflag [#allocation4], %s621
          %s623 = sand.u32 %s120, 1
          %s624 = smul.addr %s623, 8
          %s625 = scalar_lea.vmem [#allocation8], %s624
          %627 = dma.done %s622, 128
        $region60: #{tpu_custom_call.1} parent=55 // pred_fallthru
          _
      $region56: #{tpu_custom_call.1} parent=5 // pred_fallthru
        _
    $region6: #{tpu_custom_call.1} parent=1 // loop_footer
      %s21 = sadd.s32 1, %s17
    $region7: #{tpu_custom_call.1} parent=1 // loop_footer_branch
      %16 = sbr.rel target = $region3
    $region8: #{tpu_custom_call.1} parent=1 // loop_exit
      _
    %628 = vsyncpa [#allocation3], 1
    %s629 = scalar_lea.sflag [#allocation3], 1
    %630 = vsyncpa %s629, 1
    %631 = vsyncpa [#allocation6], 1
    %632 = vsyncpa [#allocation4], 1
    %s633 = scalar_lea.sflag [#allocation4], 1
    %634 = vsyncpa %s633, 1

</llo_original>
